<compile_context>
chip_gen: v7x
topology: tpu7x:2x2x1
jax: 0.10.0
libtpu: 0.0.40
codegen_flags: <defaults>
</compile_context>

<pallas_src>
import functools

import jax
import jax.numpy as jnp
from jax.experimental import pallas as pl
from jax.experimental.pallas import tpu as pltpu

NUM_CLASSES = 10
IGNORE_INDEX = 0
# Deterministic "parameters" from the module's __init__ (inverse freq weights).
CLASS_WEIGHTS = jnp.array(
    [0.0, 3.5, 153.8, 7.9, 3.9, 388.6, 3586.6, 3.4, 70.1, 118.4],
    dtype=jnp.float32,
)


def _make_wce_kernel(hw, tile_hw, tiles_per_core):
    """Builds the kernel as a closure over the static spatial sizes."""

    def kernel(logits_ref, targets_ref, weights_ref, num_ref, den_ref):
        ci = pl.program_id(0)   # core-split group (v7x: one per TensorCore)
        ni = pl.program_id(1)   # batch element
        ti = pl.program_id(2)   # spatial tile within this group

        @pl.when((ni == 0) & (ti == 0))
        def _():
            num_ref[...] = jnp.zeros_like(num_ref)
            den_ref[...] = jnp.zeros_like(den_ref)

        x = logits_ref[0].astype(jnp.float32)      # (C, T), class on sublanes
        t = targets_ref[0]                         # (1, T), int32
        w = weights_ref[...]                       # (C, 1), f32

        c = x.shape[0]

        # Lane-validity mask: lanes past H*W (ragged / clamped duplicate tiles)
        # and ignore_index pixels contribute nothing.  weight[0] == 0 already
        # zeroes ignore_index arithmetically; the select also protects against
        # garbage (possibly NaN/Inf) data in padded lanes.
        t_global = ci * tiles_per_core + ti
        lane = jax.lax.broadcasted_iota(jnp.int32, (1, tile_hw), 1)
        valid = ((t_global * tile_hw + lane) < hw) & (t != IGNORE_INDEX)

        # Numerically stable log-sum-exp over the class (sublane) axis.
        m = jnp.max(x, axis=0, keepdims=True)                    # (1, T)
        s = jnp.sum(jnp.exp(x - m), axis=0, keepdims=True)       # (1, T)
        lse = m + jnp.log(s)                                     # (1, T)

        # Fused one-hot gather: w_t = weight[target], wx_t = weight[target]*x[target].
        class_ids = jax.lax.broadcasted_iota(jnp.int32, (c, tile_hw), 0)
        w_onehot = jnp.where(class_ids == t, w, 0.0)              # (C, T)
        w_t = jnp.sum(w_onehot, axis=0, keepdims=True)            # (1, T)
        wx_t = jnp.sum(w_onehot * x, axis=0, keepdims=True)       # (1, T)

        # Weighted NLL per pixel:  w_t * (lse - x_t) = w_t * lse - wx_t.
        num_c = jnp.where(valid, w_t * lse - wx_t, 0.0)           # (1, T)
        den_c = jnp.where(valid, w_t, 0.0)                        # (1, T)

        # Lane-dense VMEM-resident accumulators (pure VPU adds).
        num_ref[...] += num_c[None, :, :]
        den_ref[...] += den_c[None, :, :]

    return kernel


@functools.partial(jax.jit, static_argnames=("tile_hw",))
def weighted_cross_entropy_loss(logits_nchw, targets, tile_hw=8192):
    """Matches WeightedCrossEntropyLoss.forward(output, targets)."""
    if isinstance(logits_nchw, dict):          # module accepts {'out': logits}
        logits_nchw = logits_nchw["out"]

    n, c, h, w = logits_nchw.shape
    assert c == NUM_CLASSES
    hw = h * w

    # Free views: no transpose, no pad, no extra HBM round trip.
    logits = logits_nchw.reshape(n, c, hw)
    tgt = targets.reshape(n, 1, hw).astype(jnp.int32)
    weights = CLASS_WEIGHTS.reshape(c, 1)

    # Lane-dense spatial tile: multiple of 128, or the full extent if small.
    if hw % 128 == 0:
        thw = min(tile_hw, hw)
    elif hw > 128:
        thw = min(tile_hw, (hw // 128) * 128)
    else:
        thw = hw
    num_tiles = pl.cdiv(hw, thw)

    # Split spatial tiles across (up to) 2 TensorCores; no-op on 1-TC chips.
    n_split = 2 if num_tiles >= 2 else 1
    tpc = pl.cdiv(num_tiles, n_split)
    clamp = num_tiles - 1

    logits_spec = pl.BlockSpec(
        (1, c, thw),
        lambda ci, ni, ti: (ni, 0, jnp.minimum(ci * tpc + ti, clamp)))
    tgt_spec = pl.BlockSpec(
        (1, 1, thw),
        lambda ci, ni, ti: (ni, 0, jnp.minimum(ci * tpc + ti, clamp)))
    w_spec = pl.BlockSpec((c, 1), lambda ci, ni, ti: (0, 0))
    acc_spec = pl.BlockSpec((1, 1, thw), lambda ci, ni, ti: (ci, 0, 0))

    num_acc, den_acc = pl.pallas_call(
        _make_wce_kernel(hw, thw, tpc),
        out_shape=(
            jax.ShapeDtypeStruct((n_split, 1, thw), jnp.float32),
            jax.ShapeDtypeStruct((n_split, 1, thw), jnp.float32),
        ),
        grid_spec=pltpu.PrefetchScalarGridSpec(
            num_scalar_prefetch=0,
            grid=(n_split, n, tpc),
            in_specs=[logits_spec, tgt_spec, w_spec],
            out_specs=(acc_spec, acc_spec),
        ),
        compiler_params=pltpu.CompilerParams(
            dimension_semantics=("parallel", "arbitrary", "arbitrary")),
    )(logits, tgt, weights)

    # PyTorch weighted 'mean' reduction: sum(w_t * nll) / sum(w_t) over valid
    # pixels.  If no valid pixel exists (den == 0) this yields NaN, same as torch.
    return jnp.sum(num_acc) / jnp.sum(den_acc)


def _reference(logits_nchw, targets):
    """Pure-JAX reference mirroring torch.nn.CrossEntropyLoss(weight, ignore_index=0)."""
    n, c, h, w = logits_nchw.shape
    x = jnp.transpose(logits_nchw, (0, 2, 3, 1)).reshape(-1, c).astype(jnp.float32)
    t = targets.reshape(-1).astype(jnp.int32)
    logp = jax.nn.log_softmax(x, axis=-1)
    lp_t = jnp.take_along_axis(logp, t[:, None], axis=-1)[:, 0]
    w_t = CLASS_WEIGHTS[t]
    valid = (t != IGNORE_INDEX).astype(jnp.float32)
    return jnp.sum(valid * w_t * (-lp_t)) / jnp.sum(valid * w_t)


if __name__ == "__main__":
    key = jax.random.PRNGKey(0)
    k1, k2 = jax.random.split(key)
    N, C, H, W = 2, NUM_CLASSES, 16, 16
    logits = jax.random.normal(k1, (N, C, H, W), dtype=jnp.float32)
    targets = jax.random.randint(k2, (N, H, W), 0, NUM_CLASSES, dtype=jnp.int32)

    loss = weighted_cross_entropy_loss(logits, targets)
    loss = jax.block_until_ready(loss)

    ref = _reference(logits, targets)
    assert jnp.allclose(loss, ref, rtol=1e-5, atol=1e-5), (loss, ref)
    print("KERNEL_OK")
</pallas_src>

<mosaic_0001>
module attributes {stable_mosaic.version = 11 : i64} {
  func.func @kernel(%arg0: i32, %arg1: i32, %arg2: i32, %arg3: memref<1x10x256xf32, #tpu.memory_space<vmem>>, %arg4: memref<1x1x256xi32, #tpu.memory_space<vmem>>, %arg5: memref<10x1xf32, #tpu.memory_space<vmem>>, %arg6: memref<1x1x256xf32, #tpu.memory_space<vmem>>, %arg7: memref<1x1x256xf32, #tpu.memory_space<vmem>>) attributes {dimension_semantics = [#tpu.dimension_semantics<parallel>, #tpu.dimension_semantics<arbitrary>, #tpu.dimension_semantics<arbitrary>], iteration_bounds = array<i64: 1, 2, 1>, scalar_prefetch = 0 : i64, scratch_operands = 0 : i64, tpu.core_type = #tpu.core_type<tc>, window_params = [{transform_indices = @transform_0, window_bounds = array<i64: 1, 10, 256>}, {transform_indices = @transform_1, window_bounds = array<i64: 1, 1, 256>}, {pipeline_mode = #tpu.pipeline_mode<synchronous>, transform_indices = @transform_2, window_bounds = array<i64: 10, 1>}, {transform_indices = @transform_3, window_bounds = array<i64: 1, 1, 256>}, {transform_indices = @transform_4, window_bounds = array<i64: 1, 1, 256>}]} {
    %c0_i32 = arith.constant 0 : i32
    %0 = arith.cmpi eq, %arg1, %c0_i32 : i32
    %c0_i32_0 = arith.constant 0 : i32
    %1 = arith.cmpi eq, %arg2, %c0_i32_0 : i32
    %2 = arith.andi %0, %1 : i1
    %3 = arith.extui %2 : i1 to i32
    %c0_i32_1 = arith.constant 0 : i32
    %4 = arith.cmpi ne, %3, %c0_i32_1 : i32
    scf.if %4 {
      %cst_29 = arith.constant 0.000000e+00 : f32
      %56 = vector.broadcast %cst_29 : f32 to vector<1x1x256xf32>
      %c0_30 = arith.constant 0 : index
      %c0_31 = arith.constant 0 : index
      %c0_32 = arith.constant 0 : index
      %57 = vector.load %arg6[%c0_30, %c0_31, %c0_32] : memref<1x1x256xf32, #tpu.memory_space<vmem>>, vector<1x1x256xf32>
      tpu.vector_store %arg6[%c0_30, %c0_31, %c0_32], %56 {strides = array<i32>} : memref<1x1x256xf32, #tpu.memory_space<vmem>>, vector<1x1x256xf32>,
      %cst_33 = arith.constant 0.000000e+00 : f32
      %58 = vector.broadcast %cst_33 : f32 to vector<1x1x256xf32>
      %c0_34 = arith.constant 0 : index
      %c0_35 = arith.constant 0 : index
      %c0_36 = arith.constant 0 : index
      %59 = vector.load %arg7[%c0_34, %c0_35, %c0_36] : memref<1x1x256xf32, #tpu.memory_space<vmem>>, vector<1x1x256xf32>
      tpu.vector_store %arg7[%c0_34, %c0_35, %c0_36], %58 {strides = array<i32>} : memref<1x1x256xf32, #tpu.memory_space<vmem>>, vector<1x1x256xf32>,
    } else {
    }
    %c0 = arith.constant 0 : index
    %c0_2 = arith.constant 0 : index
    %c0_3 = arith.constant 0 : index
    %5 = vector.load %arg3[%c0, %c0_2, %c0_3] : memref<1x10x256xf32, #tpu.memory_space<vmem>>, vector<1x10x256xf32>
    %6 = vector.shape_cast %5 : vector<1x10x256xf32> to vector<10x256xf32>
    %c0_4 = arith.constant 0 : index
    %c0_5 = arith.constant 0 : index
    %c0_6 = arith.constant 0 : index
    %7 = vector.load %arg4[%c0_4, %c0_5, %c0_6] : memref<1x1x256xi32, #tpu.memory_space<vmem>>, vector<1x1x256xi32>
    %8 = vector.shape_cast %7 : vector<1x1x256xi32> to vector<1x256xi32>
    %c0_7 = arith.constant 0 : index
    %c0_8 = arith.constant 0 : index
    %9 = vector.load %arg5[%c0_7, %c0_8] : memref<10x1xf32, #tpu.memory_space<vmem>>, vector<10x1xf32>
    %c1_i32 = arith.constant 1 : i32
    %10 = arith.muli %arg0, %c1_i32 : i32
    %11 = arith.addi %10, %arg2 : i32
    %12 = tpu.iota {dimensions = array<i32: 1>} : vector<1x256xi32>
    %c256_i32 = arith.constant 256 : i32
    %13 = arith.muli %11, %c256_i32 : i32
    %14 = vector.broadcast %13 : i32 to vector<1x256xi32>
    %15 = arith.addi %14, %12 : vector<1x256xi32>
    %c256_i32_9 = arith.constant 256 : i32
    %16 = vector.broadcast %c256_i32_9 : i32 to vector<1x256xi32>
    %17 = arith.cmpi slt, %15, %16 : vector<1x256xi32>
    %c0_i32_10 = arith.constant 0 : i32
    %18 = vector.broadcast %c0_i32_10 : i32 to vector<1x256xi32>
    %19 = arith.cmpi ne, %8, %18 : vector<1x256xi32>
    %20 = arith.andi %17, %19 : vector<1x256xi1>
    %cst = arith.constant dense<0xFF800000> : vector<256xf32>
    %21 = vector.multi_reduction <maximumf>, %6, %cst [0] : vector<10x256xf32> to vector<256xf32>
    %22 = vector.shape_cast %21 : vector<256xf32> to vector<1x256xf32>
    %23 = vector.broadcast %22 : vector<1x256xf32> to vector<10x256xf32>
    %24 = arith.subf %6, %23 : vector<10x256xf32>
    %25 = math.exp %24 : vector<10x256xf32>
    %cst_11 = arith.constant dense<0.000000e+00> : vector<256xf32>
    %26 = vector.multi_reduction <add>, %25, %cst_11 [0] : vector<10x256xf32> to vector<256xf32>
    %27 = vector.shape_cast %26 : vector<256xf32> to vector<1x256xf32>
    %28 = math.log %27 : vector<1x256xf32>
    %29 = arith.addf %22, %28 : vector<1x256xf32>
    %30 = tpu.iota {dimensions = array<i32: 0>} : vector<10x256xi32>
    %31 = vector.broadcast %8 : vector<1x256xi32> to vector<10x256xi32>
    %32 = arith.cmpi eq, %30, %31 : vector<10x256xi32>
    %cst_12 = arith.constant 0.000000e+00 : f32
    %33 = vector.shape_cast %9 : vector<10x1xf32> to vector<10x1xf32>
    %34 = vector.broadcast %33 : vector<10x1xf32> to vector<10x256xf32>
    %35 = vector.broadcast %cst_12 : f32 to vector<10x256xf32>
    %36 = arith.select %32, %34, %35 : vector<10x256xi1>, vector<10x256xf32>
    %cst_13 = arith.constant dense<0.000000e+00> : vector<256xf32>
    %37 = vector.multi_reduction <add>, %36, %cst_13 [0] : vector<10x256xf32> to vector<256xf32>
    %38 = vector.shape_cast %37 : vector<256xf32> to vector<1x256xf32>
    %39 = arith.mulf %36, %6 : vector<10x256xf32>
    %cst_14 = arith.constant dense<0.000000e+00> : vector<256xf32>
    %40 = vector.multi_reduction <add>, %39, %cst_14 [0] : vector<10x256xf32> to vector<256xf32>
    %41 = vector.shape_cast %40 : vector<256xf32> to vector<1x256xf32>
    %42 = arith.mulf %38, %29 : vector<1x256xf32>
    %43 = arith.subf %42, %41 : vector<1x256xf32>
    %cst_15 = arith.constant 0.000000e+00 : f32
    %44 = vector.broadcast %cst_15 : f32 to vector<1x256xf32>
    %45 = arith.select %20, %43, %44 : vector<1x256xi1>, vector<1x256xf32>
    %cst_16 = arith.constant 0.000000e+00 : f32
    %46 = vector.broadcast %cst_16 : f32 to vector<1x256xf32>
    %47 = arith.select %20, %38, %46 : vector<1x256xi1>, vector<1x256xf32>
    %c0_17 = arith.constant 0 : index
    %c0_18 = arith.constant 0 : index
    %c0_19 = arith.constant 0 : index
    %48 = vector.load %arg6[%c0_17, %c0_18, %c0_19] : memref<1x1x256xf32, #tpu.memory_space<vmem>>, vector<1x1x256xf32>
    %49 = vector.shape_cast %45 : vector<1x256xf32> to vector<1x1x256xf32>
    %50 = arith.addf %48, %49 : vector<1x1x256xf32>
    %c0_20 = arith.constant 0 : index
    %c0_21 = arith.constant 0 : index
    %c0_22 = arith.constant 0 : index
    %51 = vector.load %arg6[%c0_20, %c0_21, %c0_22] : memref<1x1x256xf32, #tpu.memory_space<vmem>>, vector<1x1x256xf32>
    tpu.vector_store %arg6[%c0_20, %c0_21, %c0_22], %50 {strides = array<i32>} : memref<1x1x256xf32, #tpu.memory_space<vmem>>, vector<1x1x256xf32>,
    %c0_23 = arith.constant 0 : index
    %c0_24 = arith.constant 0 : index
    %c0_25 = arith.constant 0 : index
    %52 = vector.load %arg7[%c0_23, %c0_24, %c0_25] : memref<1x1x256xf32, #tpu.memory_space<vmem>>, vector<1x1x256xf32>
    %53 = vector.shape_cast %47 : vector<1x256xf32> to vector<1x1x256xf32>
    %54 = arith.addf %52, %53 : vector<1x1x256xf32>
    %c0_26 = arith.constant 0 : index
    %c0_27 = arith.constant 0 : index
    %c0_28 = arith.constant 0 : index
    %55 = vector.load %arg7[%c0_26, %c0_27, %c0_28] : memref<1x1x256xf32, #tpu.memory_space<vmem>>, vector<1x1x256xf32>
    tpu.vector_store %arg7[%c0_26, %c0_27, %c0_28], %54 {strides = array<i32>} : memref<1x1x256xf32, #tpu.memory_space<vmem>>, vector<1x1x256xf32>,
    return
  }
  func.func @transform_0(%arg0: i32, %arg1: i32, %arg2: i32) -> (i32, i32, i32) {
    %c1_i32 = arith.constant 1 : i32
    %0 = arith.muli %arg0, %c1_i32 : i32
    %1 = arith.addi %0, %arg2 : i32
    %c0_i32 = arith.constant 0 : i32
    %2 = arith.minsi %1, %c0_i32 : i32
    %c0_i32_0 = arith.constant 0 : i32
    %c0_i32_1 = arith.constant 0 : i32
    return %arg1, %c0_i32_0, %2 : i32, i32, i32
  }
  func.func @transform_1(%arg0: i32, %arg1: i32, %arg2: i32) -> (i32, i32, i32) {
    %c1_i32 = arith.constant 1 : i32
    %0 = arith.muli %arg0, %c1_i32 : i32
    %1 = arith.addi %0, %arg2 : i32
    %c0_i32 = arith.constant 0 : i32
    %2 = arith.minsi %1, %c0_i32 : i32
    %c0_i32_0 = arith.constant 0 : i32
    %c0_i32_1 = arith.constant 0 : i32
    return %arg1, %c0_i32_0, %2 : i32, i32, i32
  }
  func.func @transform_2(%arg0: i32, %arg1: i32, %arg2: i32) -> (i32, i32) {
    %c0_i32 = arith.constant 0 : i32
    %c0_i32_0 = arith.constant 0 : i32
    %c0_i32_1 = arith.constant 0 : i32
    return %c0_i32, %c0_i32_0 : i32, i32
  }
  func.func @transform_3(%arg0: i32, %arg1: i32, %arg2: i32) -> (i32, i32, i32) {
    %c0_i32 = arith.constant 0 : i32
    %c0_i32_0 = arith.constant 0 : i32
    %c0_i32_1 = arith.constant 0 : i32
    return %arg0, %c0_i32, %c0_i32_0 : i32, i32, i32
  }
  func.func @transform_4(%arg0: i32, %arg1: i32, %arg2: i32) -> (i32, i32, i32) {
    %c0_i32 = arith.constant 0 : i32
    %c0_i32_0 = arith.constant 0 : i32
    %c0_i32_1 = arith.constant 0 : i32
    return %arg0, %c0_i32, %c0_i32_0 : i32, i32, i32
  }
}

</mosaic_0001>

<llo_original>
// kernel: weighted_cross_entropy_loss.1
$region0: #{weighted_cross_entropy_loss.1}
  #allocation0 [shape = 'u32[]', space=smem, size = 0x4, offset = 0x4, fixed_abs, tag = 'smem constant byte address 0x4 - core index']
  #allocation1 [shape = 'u32[144,128]{1,0:T(1,128)}', space=vmem, size = 0x12000, scoped, tag = 'internal scratch']
  %s0 = inlined_call_operand.vmem [shape: f32[2,10,256], index: 0, kind: input, shape index: {}]
  %s1 = inlined_call_operand.vmem [shape: s32[2,1,256], index: 1, kind: input, shape index: {}]
  %s2 = inlined_call_operand.vmem [shape: f32[10,1], index: 2, kind: input, shape index: {}]
  %s3 = inlined_call_operand.vmem [shape: f32[1,1,256], index: 3, kind: output, shape index: {0}]
  %s4 = inlined_call_operand.vmem [shape: f32[1,1,256], index: 4, kind: output, shape index: {1}]
  %5 = xla_tuple %s3, %s4
  %s6 = sld [smem:[#allocation0]]
  $region57: #{weighted_cross_entropy_loss.1} parent=0
    _
  %s8 = ssub.s32 1, %s6
  %s9 = scalar_select 0, %s8, %s6
  loop: start=0, step=1, limit=4
  $region2: #{weighted_cross_entropy_loss.1} parent=0 // loop_pre_header
    _
  $region3: #{weighted_cross_entropy_loss.1} parent=0 // loop_header
    %s11 = sphi 0, %s15
    %p12 = scmp.ge.s32.totalorder %s11, 4
    %s18 = sphi 0, %s37
    %s19 = sphi 0, %s33
    %s20 = sphi 0, %s29
    %s21 = sphi 0, %s18
    %s22 = sphi 0, %s19
    %s23 = sphi 0, %s20
    %s24 = sphi 0, %s21
    %s25 = sphi 0, %s22
    %s26 = sphi 0, %s23
    %s48 = sphi 0, %s50
    %s51 = sphi 0, %s48
    %s52 = sphi 0, %s51
    %s68 = sphi 0, %s52
    %s82 = sphi 0, %s84
    %s85 = sphi 0, %s82
    %s86 = sphi 0, %s85
    %s102 = sphi 0, %s86
    %s106 = sphi 0, %s106
    %s108 = sphi 0, %s106
    %s109 = sphi 0, %s108
    %s123 = sphi 0, %s109
    %s129 = sphi 0, %s131
    %s132 = sphi 0, %s129
    %s133 = sphi 0, %s132
    %s149 = sphi 0, %s133
    %s155 = sphi 0, %s157
    %s158 = sphi 0, %s155
    %s159 = sphi 0, %s158
    %s175 = sphi 0, %s159
  $region4: #{weighted_cross_entropy_loss.1} parent=0 // loop_header_branch
    %14 = sbr.rel (%p12) target = $region8
  $region5: #{weighted_cross_entropy_loss.1} parent=0 // loop_body
    %s16 = ssub.s32 %s11, 1
    %s17 = ssub.s32 %s11, 2
    %s27 = sadd.s32 1, %s20
    %p28 = scmp.ge.s32.totalorder %s27, 1
    %s29 = scalar_select %p28, 0, %s27
    %s30 = sadd.s32 1, %s19
    %s31 = scalar_select %p28, %s30, %s19
    %p32 = scmp.ge.s32.totalorder %s31, 2
    %s33 = scalar_select %p32, 0, %s31
    %s34 = sadd.s32 1, %s18
    %s35 = scalar_select %p32, %s34, %s18
    %p36 = scmp.ge.s32.totalorder %s35, 1
    %s37 = scalar_select %p36, 0, %s35
    %s38 = sadd.s32 %s18, %s20
    %p39 = scmp.lt.s32.totalorder %s38, 0
    %s40 = scalar_select %p39, %s38, 0
    %s41 = sadd.s32 %s37, %s29
    %p42 = scmp.lt.s32.totalorder %s41, 0
    %s43 = scalar_select %p42, %s41, 0
    %s44 = ssub.s32 %s19, %s33
    %s45 = ssub.s32 %s40, %s43
    %s46 = sor.u32 %s44, %s45
    %p47 = scmp.eq.s32.totalorder %s46, 0
    %s49 = sadd.s32 %s48, 1
    %s50 = scalar_select %p47, %s48, %s49
    %p53 = pneg %p47
    %p54 = scmp.eq.s32.totalorder %s11, 1
    %p55 = por %p53, %p54
    %p56 = scmp.ne.s32.totalorder %s48, %s51
    %p57 = scmp.eq.s32.totalorder %s11, 0
    %p58 = por %p56, %p57
    %p59 = scmp.ne.s32.totalorder %s48, %s51
    %p60 = scmp.eq.s32.totalorder %s16, 1
    %p61 = por %p59, %p60
    %p62 = scmp.ne.s32.totalorder %s51, %s52
    %p63 = scmp.eq.s32.totalorder %s16, 0
    %p64 = por %p62, %p63
    %p65 = scmp.ne.s32.totalorder %s51, %s52
    %p66 = scmp.eq.s32.totalorder %s17, 1
    %p67 = por %p65, %p66
    %p69 = scmp.ne.s32.totalorder %s52, %s68
    %p70 = scmp.eq.s32.totalorder %s17, 0
    %p71 = por %p69, %p70
    %s72 = sadd.s32 %s18, %s20
    %p73 = scmp.lt.s32.totalorder %s72, 0
    %s74 = scalar_select %p73, %s72, 0
    %s75 = sadd.s32 %s37, %s29
    %p76 = scmp.lt.s32.totalorder %s75, 0
    %s77 = scalar_select %p76, %s75, 0
    %s78 = ssub.s32 %s19, %s33
    %s79 = ssub.s32 %s74, %s77
    %s80 = sor.u32 %s78, %s79
    %p81 = scmp.eq.s32.totalorder %s80, 0
    %s83 = sadd.s32 %s82, 1
    %s84 = scalar_select %p81, %s82, %s83
    %p87 = pneg %p81
    %p88 = scmp.eq.s32.totalorder %s11, 1
    %p89 = por %p87, %p88
    %p90 = scmp.ne.s32.totalorder %s82, %s85
    %p91 = scmp.eq.s32.totalorder %s11, 0
    %p92 = por %p90, %p91
    %p93 = scmp.ne.s32.totalorder %s82, %s85
    %p94 = scmp.eq.s32.totalorder %s16, 1
    %p95 = por %p93, %p94
    %p96 = scmp.ne.s32.totalorder %s85, %s86
    %p97 = scmp.eq.s32.totalorder %s16, 0
    %p98 = por %p96, %p97
    %p99 = scmp.ne.s32.totalorder %s85, %s86
    %p100 = scmp.eq.s32.totalorder %s17, 1
    %p101 = por %p99, %p100
    %p103 = scmp.ne.s32.totalorder %s86, %s102
    %p104 = scmp.eq.s32.totalorder %s17, 0
    %p105 = por %p103, %p104
    %s107 = sadd.s32 %s106, 1
    %p110 = scmp.eq.s32.totalorder %s11, 1
    %p111 = scmp.ne.s32.totalorder %s106, %s108
    %p112 = scmp.eq.s32.totalorder %s11, 0
    %p113 = por %p111, %p112
    %p114 = scmp.ne.s32.totalorder %s106, %s108
    %p115 = scmp.eq.s32.totalorder %s16, 1
    %p116 = por %p114, %p115
    %p117 = scmp.ne.s32.totalorder %s108, %s109
    %p118 = scmp.eq.s32.totalorder %s16, 0
    %p119 = por %p117, %p118
    %p120 = scmp.ne.s32.totalorder %s108, %s109
    %p121 = scmp.eq.s32.totalorder %s17, 1
    %p122 = por %p120, %p121
    %p124 = scmp.ne.s32.totalorder %s109, %s123
    %p125 = scmp.eq.s32.totalorder %s17, 0
    %p126 = por %p124, %p125
    %s127 = ssub.s32 %s18, %s37
    %p128 = scmp.eq.s32.totalorder %s127, 0
    %s130 = sadd.s32 %s129, 1
    %s131 = scalar_select %p128, %s129, %s130
    %p134 = pneg %p128
    %p135 = scmp.eq.s32.totalorder %s11, 1
    %p136 = por %p134, %p135
    %p137 = scmp.ne.s32.totalorder %s129, %s132
    %p138 = scmp.eq.s32.totalorder %s11, 0
    %p139 = por %p137, %p138
    %p140 = scmp.ne.s32.totalorder %s129, %s132
    %p141 = scmp.eq.s32.totalorder %s16, 1
    %p142 = por %p140, %p141
    %p143 = scmp.ne.s32.totalorder %s132, %s133
    %p144 = scmp.eq.s32.totalorder %s16, 0
    %p145 = por %p143, %p144
    %p146 = scmp.ne.s32.totalorder %s132, %s133
    %p147 = scmp.eq.s32.totalorder %s17, 1
    %p148 = por %p146, %p147
    %p150 = scmp.ne.s32.totalorder %s133, %s149
    %p151 = scmp.eq.s32.totalorder %s17, 0
    %p152 = por %p150, %p151
    %s153 = ssub.s32 %s18, %s37
    %p154 = scmp.eq.s32.totalorder %s153, 0
    %s156 = sadd.s32 %s155, 1
    %s157 = scalar_select %p154, %s155, %s156
    %p160 = pneg %p154
    %p161 = scmp.eq.s32.totalorder %s11, 1
    %p162 = por %p160, %p161
    %p163 = scmp.ne.s32.totalorder %s155, %s158
    %p164 = scmp.eq.s32.totalorder %s11, 0
    %p165 = por %p163, %p164
    %p166 = scmp.ne.s32.totalorder %s155, %s158
    %p167 = scmp.eq.s32.totalorder %s16, 1
    %p168 = por %p166, %p167
    %p169 = scmp.ne.s32.totalorder %s158, %s159
    %p170 = scmp.eq.s32.totalorder %s16, 0
    %p171 = por %p169, %p170
    %p172 = scmp.ne.s32.totalorder %s158, %s159
    %p173 = scmp.eq.s32.totalorder %s17, 1
    %p174 = por %p172, %p173
    %p176 = scmp.ne.s32.totalorder %s159, %s175
    %p177 = scmp.eq.s32.totalorder %s17, 0
    %p178 = por %p176, %p177
    %p179 = scmp.le.s32.totalorder 1, %s11
    %p180 = scmp.lt.s32.totalorder %s11, 3
    %p181 = pnand %p179, %p180
    %p182 = pneg %p181
    // Predicated region
    $region9: #{weighted_cross_entropy_loss.1} parent=5 // pred_check
      _
    $region10: #{weighted_cross_entropy_loss.1} parent=5 // pred_check_branch
      %184 = sbr.rel (%p181) target = $region12
    $region11: #{weighted_cross_entropy_loss.1} parent=5 // pred_region
      %s185 = ssub.s32 %s11, 1
      // Predicated region
      $region13: #{weighted_cross_entropy_loss.1} parent=11 // pred_check
        %p186 = pneg %p119
      $region14: #{weighted_cross_entropy_loss.1} parent=11 // pred_check_branch
        %188 = sbr.rel (%p186) target = $region16
      $region15: #{weighted_cross_entropy_loss.1} parent=11 // pred_region
        _
      $region16: #{weighted_cross_entropy_loss.1} parent=11 // pred_fallthru
        _
    $region12: #{weighted_cross_entropy_loss.1} parent=5 // pred_fallthru
      _
    %p189 = scmp.lt.s32.totalorder %s11, 2
    // Predicated region
    $region17: #{weighted_cross_entropy_loss.1} parent=5 // pred_check
      %p190 = pneg %p189
    $region18: #{weighted_cross_entropy_loss.1} parent=5 // pred_check_branch
      %192 = sbr.rel (%p190) target = $region20
    $region19: #{weighted_cross_entropy_loss.1} parent=5 // pred_region
      // Predicated region
      $region21: #{weighted_cross_entropy_loss.1} parent=19 // pred_check
        %p193 = pneg %p58
      $region22: #{weighted_cross_entropy_loss.1} parent=19 // pred_check_branch
        %195 = sbr.rel (%p193) target = $region24
      $region23: #{weighted_cross_entropy_loss.1} parent=19 // pred_region
        %s196 = sadd.s32 %s18, %s20
        %p197 = scmp.lt.s32.totalorder %s196, 0
        %s198 = scalar_select %p197, %s196, 0
        %s199 = smul.u32 2, %s198
        %p200 = scmp.lt.s32.totalorder %s19, 1
        %s201 = scalar_select %p200, %s19, 1
        %p202 = scmp.lt.s32.totalorder %s199, 1
        %s203 = scalar_select %p202, %s199, 1
        %s204 = smul.addr %s201, 4
        %s205 = sadd.s32 %s203, %s204
        %s206 = smul.addr %s205, 8
        %s207 = scalar_lea.vmem %s0, %s206
        %s208 = sadd.s32 %s18, %s20
        %p209 = scmp.lt.s32.totalorder %s208, 0
        %s210 = scalar_select %p209, %s208, 0
        %s211 = smul.u32 2, %s210
      $region24: #{weighted_cross_entropy_loss.1} parent=19 // pred_fallthru
        _
      // Predicated region
      $region25: #{weighted_cross_entropy_loss.1} parent=19 // pred_check
        %p212 = pneg %p92
      $region26: #{weighted_cross_entropy_loss.1} parent=19 // pred_check_branch
        %214 = sbr.rel (%p212) target = $region28
      $region27: #{weighted_cross_entropy_loss.1} parent=19 // pred_region
        %s215 = sadd.s32 %s18, %s20
        %p216 = scmp.lt.s32.totalorder %s215, 0
        %s217 = scalar_select %p216, %s215, 0
        %s218 = smul.u32 2, %s217
        %p219 = scmp.lt.s32.totalorder %s19, 1
        %s220 = scalar_select %p219, %s19, 1
        %p221 = scmp.lt.s32.totalorder %s218, 1
        %s222 = scalar_select %p221, %s218, 1
        %s223 = smul.addr %s220, 2
        %s224 = sadd.s32 %s222, %s223
        %s225 = scalar_lea.vmem %s1, %s224
        %s226 = sadd.s32 %s18, %s20
        %p227 = scmp.lt.s32.totalorder %s226, 0
        %s228 = scalar_select %p227, %s226, 0
        %s229 = smul.u32 2, %s228
      $region28: #{weighted_cross_entropy_loss.1} parent=19 // pred_fallthru
        _
    $region20: #{weighted_cross_entropy_loss.1} parent=5 // pred_fallthru
      _
    %p230 = scmp.le.s32.totalorder 1, %s11
    %p231 = scmp.lt.s32.totalorder %s11, 3
    %p232 = pnand %p230, %p231
    %p233 = pneg %p232
    // Predicated region
    $region29: #{weighted_cross_entropy_loss.1} parent=5 // pred_check
      _
    $region30: #{weighted_cross_entropy_loss.1} parent=5 // pred_check_branch
      %235 = sbr.rel (%p232) target = $region32
    $region31: #{weighted_cross_entropy_loss.1} parent=5 // pred_region
      %s236 = ssub.s32 %s11, 1
      %s237 = sadd.s32 %s21, %s23
      %p238 = scmp.lt.s32.totalorder %s237, 0
      %s239 = scalar_select %p238, %s237, 0
      %s240 = smul.u32 2, %s239
      %p241 = scmp.lt.s32.totalorder %s22, 1
      %s242 = scalar_select %p241, %s22, 1
      %p243 = scmp.lt.s32.totalorder %s240, 1
      %s244 = scalar_select %p243, %s240, 1
      %s245 = smul.addr %s242, 4
      %s246 = sadd.s32 %s244, %s245
      %s247 = smul.addr %s246, 8
      %s248 = scalar_lea.vmem %s0, %s247
      %p249 = pneg %p64
      %p250 = pneg %p61
      %s251 = sadd.s32 %s21, %s23
      %p252 = scmp.lt.s32.totalorder %s251, 0
      %s253 = scalar_select %p252, %s251, 0
      %s254 = smul.u32 2, %s253
      %p255 = scmp.lt.s32.totalorder %s22, 1
      %s256 = scalar_select %p255, %s22, 1
      %p257 = scmp.lt.s32.totalorder %s254, 1
      %s258 = scalar_select %p257, %s254, 1
      %s259 = smul.addr %s256, 2
      %s260 = sadd.s32 %s258, %s259
      %s261 = scalar_lea.vmem %s1, %s260
      %p262 = pneg %p98
      %p263 = pneg %p95
      %p264 = pneg %p119
      %p265 = pneg %p116
      %p266 = pneg %p145
      %p267 = pneg %p142
      %p268 = scmp.lt.s32.totalorder %s21, 0
      %s269 = scalar_select %p268, %s21, 0
      %s270 = smul.addr %s269, 2
      %s271 = scalar_lea.vmem %s3, %s270
      %p272 = pneg %p171
      %p273 = pneg %p168
      %p274 = scmp.lt.s32.totalorder %s21, 0
      %s275 = scalar_select %p274, %s21, 0
      %s276 = smul.addr %s275, 2
      %s277 = scalar_lea.vmem %s4, %s276
      %s278 = sadd.s32 %s21, %s23
      %p279 = scmp.lt.s32.totalorder %s278, 0
      %s280 = scalar_select %p279, %s278, 0
      %s281 = smul.u32 2, %s280
      %p282 = scmp.lt.s32.totalorder %s22, 1
      %s283 = scalar_select %p282, %s22, 1
      %p284 = scmp.lt.s32.totalorder %s281, 1
      %s285 = scalar_select %p284, %s281, 1
      %s286 = smul.addr %s283, 4
      %s287 = sadd.s32 %s285, %s286
      %s288 = smul.addr %s287, 8
      %s289 = scalar_lea.vmem %s0, %s288
      %s290 = sadd.s32 %s21, %s23
      %p291 = scmp.lt.s32.totalorder %s290, 0
      %s292 = scalar_select %p291, %s290, 0
      %s293 = smul.u32 2, %s292
      %s294 = sadd.s32 %s21, %s23
      %p295 = scmp.lt.s32.totalorder %s294, 0
      %s296 = scalar_select %p295, %s294, 0
      %s297 = smul.u32 2, %s296
      %p298 = scmp.lt.s32.totalorder %s22, 1
      %s299 = scalar_select %p298, %s22, 1
      %p300 = scmp.lt.s32.totalorder %s297, 1
      %s301 = scalar_select %p300, %s297, 1
      %s302 = smul.addr %s299, 2
      %s303 = sadd.s32 %s301, %s302
      %s304 = scalar_lea.vmem %s1, %s303
      %s305 = sadd.s32 %s21, %s23
      %p306 = scmp.lt.s32.totalorder %s305, 0
      %s307 = scalar_select %p306, %s305, 0
      %s308 = smul.u32 2, %s307
      %p309 = scmp.lt.s32.totalorder %s21, 0
      %s310 = scalar_select %p309, %s21, 0
      %s311 = smul.addr %s310, 2
      %s312 = scalar_lea.vmem %s3, %s311
      %p313 = scmp.lt.s32.totalorder %s21, 0
      %s314 = scalar_select %p313, %s21, 0
      %s315 = smul.addr %s314, 2
      %s316 = scalar_lea.vmem %s4, %s315
      %p317 = scmp.eq.s32.totalorder %s22, 0
      %p318 = scmp.eq.s32.totalorder %s23, 0
      %p319 = pnand %p317, %p318
      %p320 = pneg %p319
      // Predicated region
      $region33: #{weighted_cross_entropy_loss.1} parent=31 // pred_check
        _
      $region34: #{weighted_cross_entropy_loss.1} parent=31 // pred_check_branch
        %322 = sbr.rel (%p319) target = $region36
      $region35: #{weighted_cross_entropy_loss.1} parent=31 // pred_region
        %v323 = vlaneseq
        %vm324 = vcmp.ge.s32.totalorder %v323, 0
        %vm325 = vcmp.lt.s32.totalorder %v323, 256
        %vm326 = vmand %vm324, %vm325
        %327 = vst.msk [vmem:[%s312] sm:$0x3] %vm326, 0.0
        %328 = vst.msk [vmem:[%s316] sm:$0x3] %vm326, 0.0
      $region36: #{weighted_cross_entropy_loss.1} parent=31 // pred_fallthru
        _
      %v329 = vld [vmem:[%s289] sm:$0xff]
      %v330 = vld [vmem:[%s289 + $0x8] sm:$0xff]
      %v331 = vld [vmem:[%s289 + $0x10] sm:$0x3]
      %v332 = vld [vmem:[%s289 + $0x18] sm:$0x3]
      %v333 = vld [vmem:[%s304] sm:$0x3]
      %v334 = vld [vmem:[%s2] sm:$0xff]
      %v335 = vld [vmem:[%s2 + $0x8] sm:$0x3]
      %s336 = sadd.s32 %s21, %s23
      %v337 = vlaneseq
      %v338 = vand.u32 %v337, 127
      %v339 = vadd.s32 %v338, 128
      %s340 = smul.u32 %s336, 256
      %v341 = vstv %s340
      %v342 = vadd.s32 %v341, %v338
      %v343 = vadd.s32 %v341, %v339
      %vm344 = vcmp.lt.s32.totalorder %v342, 256
      %vm345 = vcmp.lt.s32.totalorder %v343, 256
      %vm346 = vcmp.ne.s32.totalorder %v333, 0
      %v347 = vsel %vm346, 1, 0
      %v348 = vlaneseq
      %v349 = vshrl.u32 %v348, 7
      %v350 = vsub.s32 0, %v349
      %v351 = vrot.slane %v347, %v350
      %v352 = vlaneseq
      %v353 = vshrl.u32 %v352, 7
      %v354 = vsub.s32 1, %v353
      %v355 = vrot.slane %v347, %v354
      %vm356 = vcmp.ne.s32.totalorder %v351, 0
      %vm357 = vcmp.ne.s32.totalorder %v355, 0
      %vm358 = vmand %vm344, %vm356
      %vm359 = vmand %vm345, %vm357
      %vm360 = vcmask 1041408
      %v361 = vsel %vm360, %v331, -inf
      %v362 = vmax.f32 %v329, %v361
      %v363 = vrot.slane %v362, 4
      %v364 = vmax.f32 %v362, %v363
      %v365 = vrot.slane %v364, 2
      %v366 = vmax.f32 %v364, %v365
      %v367 = vrot.slane %v366, 1
      %v368 = vmax.f32 %v366, %v367
      %v369 = vsel %vm360, %v332, -inf
      %v370 = vmax.f32 %v330, %v369
      %v371 = vrot.slane %v370, 4
      %v372 = vmax.f32 %v370, %v371
      %v373 = vrot.slane %v372, 2
      %v374 = vmax.f32 %v372, %v373
      %v375 = vrot.slane %v374, 1
      %v376 = vmax.f32 %v374, %v375
      %v377 = vsub.f32 %v329, %v368
      %v378 = vsub.f32 %v330, %v376
      %v379 = vsub.f32 %v331, %v368
      %v380 = vsub.f32 %v332, %v376
      %v381 = vmul.f32 %v377, 1.442695
      %v382 = vpow.pop %v381
      %v383 = vmul.f32 %v378, 1.442695
      %v384 = vpow.pop %v383
      %v385 = vmul.f32 %v379, 1.442695
      %v386 = vpow.pop %v385
      %v387 = vmul.f32 %v380, 1.442695
      %v388 = vpow.pop %v387
      %v389 = vsel %vm360, %v386, 0.0
      %v390 = vadd.f32 %v382, %v389
      %v391 = vrot.slane %v390, 4
      %v392 = vadd.f32 %v390, %v391
      %v393 = vrot.slane %v392, 2
      %v394 = vadd.f32 %v392, %v393
      %v395 = vrot.slane %v394, 1
      %v396 = vadd.f32 %v394, %v395
      %v397 = vsel %vm360, %v388, 0.0
      %v398 = vadd.f32 %v384, %v397
      %v399 = vrot.slane %v398, 4
      %v400 = vadd.f32 %v398, %v399
      %v401 = vrot.slane %v400, 2
      %v402 = vadd.f32 %v400, %v401
      %v403 = vrot.slane %v402, 1
      %v404 = vadd.f32 %v402, %v403
      %v405 = vlog2.pop %v396
      %v406 = vmul.f32 %v405, 0.6931472
      %v407 = vlog2.pop %v404
      %v408 = vmul.f32 %v407, 0.6931472
      %v409 = vadd.f32 %v368, %v406
      %v410 = vadd.f32 %v376, %v408
      %v411 = vlaneseq
      %v412 = vshrl.u32 %v411, 7
      %v413 = vadd.s32 %v412, 8
      %v414 = vlaneseq
      %v415 = vshrl.u32 %v414, 7
      %v416 = vsub.s32 0, %v415
      %v417 = vrot.slane %v333, %v416
      %v418 = vlaneseq
      %v419 = vshrl.u32 %v418, 7
      %v420 = vsub.s32 1, %v419
      %v421 = vrot.slane %v333, %v420
      %vm422 = vcmp.eq.s32.totalorder %v412, %v417
      %vm423 = vcmp.eq.s32.totalorder %v412, %v421
      %vm424 = vcmp.eq.s32.totalorder %v413, %v417
      %vm425 = vcmp.eq.s32.totalorder %v413, %v421
      %427 = vset.pattern.permute.xlu0 0
      %428 = vperm.xlu0 %427, %v334
      %v429 = vpop.permute.xlu0 %428
      %432 = vset.pattern.permute.xlu0 0
      %433 = vperm.xlu0 %432, %v335
      %v434 = vpop.permute.xlu0 %433
      %v436 = vsel %vm422, %v429, 0.0
      %v437 = vsel %vm423, %v429, 0.0
      %v438 = vsel %vm424, %v434, 0.0
      %v439 = vsel %vm425, %v434, 0.0
      %v440 = vsel %vm360, %v438, 0.0
      %v441 = vadd.f32 %v436, %v440
      %v442 = vrot.slane %v441, 4
      %v443 = vadd.f32 %v441, %v442
      %v444 = vrot.slane %v443, 2
      %v445 = vadd.f32 %v443, %v444
      %v446 = vrot.slane %v445, 1
      %v447 = vadd.f32 %v445, %v446
      %v448 = vsel %vm360, %v439, 0.0
      %v449 = vadd.f32 %v437, %v448
      %v450 = vrot.slane %v449, 4
      %v451 = vadd.f32 %v449, %v450
      %v452 = vrot.slane %v451, 2
      %v453 = vadd.f32 %v451, %v452
      %v454 = vrot.slane %v453, 1
      %v455 = vadd.f32 %v453, %v454
      %v456 = vmul.f32 %v436, %v329
      %v457 = vmul.f32 %v437, %v330
      %v458 = vmul.f32 %v438, %v331
      %v459 = vmul.f32 %v439, %v332
      %v460 = vsel %vm360, %v458, 0.0
      %v461 = vadd.f32 %v456, %v460
      %v462 = vrot.slane %v461, 4
      %v463 = vadd.f32 %v461, %v462
      %v464 = vrot.slane %v463, 2
      %v465 = vadd.f32 %v463, %v464
      %v466 = vrot.slane %v465, 1
      %v467 = vadd.f32 %v465, %v466
      %v468 = vsel %vm360, %v459, 0.0
      %v469 = vadd.f32 %v457, %v468
      %v470 = vrot.slane %v469, 4
      %v471 = vadd.f32 %v469, %v470
      %v472 = vrot.slane %v471, 2
      %v473 = vadd.f32 %v471, %v472
      %v474 = vrot.slane %v473, 1
      %v475 = vadd.f32 %v473, %v474
      %v476 = vmul.f32 %v447, %v409
      %v477 = vmul.f32 %v455, %v410
      %v478 = vsub.f32 %v476, %v467
      %v479 = vsub.f32 %v477, %v475
      %v480 = vsel %vm358, %v478, 0.0
      %v481 = vsel %vm359, %v479, 0.0
      %v482 = vsel %vm358, %v447, 0.0
      %v483 = vsel %vm359, %v455, 0.0
      %v484 = vld [vmem:[%s312] sm:$0x3]
      %v487 = vcombine.low %v480, %v481
      %v489 = vunpack.c.l.s4 1966171168
      %v490 = vunpack.c.0.s8 %v489
      %v491 = vlaneseq
      %v492 = vshrl.u32 %v491, 7
      %v493 = vsub.s32 %v490, %v492
      %v494 = vrot.slane %v487, %v493
      %v496 = vunpack.c.l.s4 1966171168
      %v497 = vunpack.c.0.s8 %v496
      %v498 = vlaneseq
      %v499 = vshrl.u32 %v498, 7
      %v500 = vsub.s32 %v497, %v499
      %v501 = vrot.slane %v494, %v500
      %v503 = vadd.f32 %v484, %v501
      %v504 = vlaneseq
      %vm505 = vcmp.ge.s32.totalorder %v504, 0
      %vm506 = vcmp.lt.s32.totalorder %v504, 256
      %vm507 = vmand %vm505, %vm506
      %508 = vst.msk [vmem:[%s312] sm:$0x3] %vm507, %v503
      %v509 = vld [vmem:[%s316] sm:$0x3]
      %v512 = vcombine.low %v482, %v483
      %v514 = vunpack.c.l.s4 1966171168
      %v515 = vunpack.c.0.s8 %v514
      %v516 = vlaneseq
      %v517 = vshrl.u32 %v516, 7
      %v518 = vsub.s32 %v515, %v517
      %v519 = vrot.slane %v512, %v518
      %v521 = vunpack.c.l.s4 1966171168
      %v522 = vunpack.c.0.s8 %v521
      %v523 = vlaneseq
      %v524 = vshrl.u32 %v523, 7
      %v525 = vsub.s32 %v522, %v524
      %v526 = vrot.slane %v519, %v525
      %v528 = vadd.f32 %v509, %v526
      %529 = vst.msk [vmem:[%s316] sm:$0x3] %vm507, %v528
      %p530 = scmp.lt.s32.totalorder %s21, 0
      %s531 = scalar_select %p530, %s21, 0
      %s532 = smul.addr %s531, 2
      %s533 = scalar_lea.vmem %s3, %s532
      %p534 = scmp.lt.s32.totalorder %s21, 0
      %s535 = scalar_select %p534, %s21, 0
      %s536 = smul.addr %s535, 2
      %s537 = scalar_lea.vmem %s4, %s536
      // Predicated region
      $region37: #{weighted_cross_entropy_loss.1} parent=31 // pred_check
        %p538 = pneg %p142
      $region38: #{weighted_cross_entropy_loss.1} parent=31 // pred_check_branch
        %540 = sbr.rel (%p538) target = $region40
      $region39: #{weighted_cross_entropy_loss.1} parent=31 // pred_region
        _
      $region40: #{weighted_cross_entropy_loss.1} parent=31 // pred_fallthru
        _
      // Predicated region
      $region41: #{weighted_cross_entropy_loss.1} parent=31 // pred_check
        %p541 = pneg %p168
      $region42: #{weighted_cross_entropy_loss.1} parent=31 // pred_check_branch
        %543 = sbr.rel (%p541) target = $region44
      $region43: #{weighted_cross_entropy_loss.1} parent=31 // pred_region
        _
      $region44: #{weighted_cross_entropy_loss.1} parent=31 // pred_fallthru
        _
      // Predicated region
      $region45: #{weighted_cross_entropy_loss.1} parent=31 // pred_check
        %p544 = pneg %p142
      $region46: #{weighted_cross_entropy_loss.1} parent=31 // pred_check_branch
        %546 = sbr.rel (%p544) target = $region48
      $region47: #{weighted_cross_entropy_loss.1} parent=31 // pred_region
        %p547 = scmp.lt.s32.totalorder %s21, 0
        %s548 = scalar_select %p547, %s21, 0
        %s549 = smul.addr %s548, 2
        %s550 = scalar_lea.vmem %s3, %s549
      $region48: #{weighted_cross_entropy_loss.1} parent=31 // pred_fallthru
        _
      // Predicated region
      $region49: #{weighted_cross_entropy_loss.1} parent=31 // pred_check
        %p551 = pneg %p168
      $region50: #{weighted_cross_entropy_loss.1} parent=31 // pred_check_branch
        %553 = sbr.rel (%p551) target = $region52
      $region51: #{weighted_cross_entropy_loss.1} parent=31 // pred_region
        %p554 = scmp.lt.s32.totalorder %s21, 0
        %s555 = scalar_select %p554, %s21, 0
        %s556 = smul.addr %s555, 2
        %s557 = scalar_lea.vmem %s4, %s556
      $region52: #{weighted_cross_entropy_loss.1} parent=31 // pred_fallthru
        _
    $region32: #{weighted_cross_entropy_loss.1} parent=5 // pred_fallthru
      _
    %p558 = scmp.le.s32.totalorder 2, %s11
    // Predicated region
    $region53: #{weighted_cross_entropy_loss.1} parent=5 // pred_check
      %p559 = pneg %p558
    $region54: #{weighted_cross_entropy_loss.1} parent=5 // pred_check_branch
      %561 = sbr.rel (%p559) target = $region56
    $region55: #{weighted_cross_entropy_loss.1} parent=5 // pred_region
      %s562 = ssub.s32 %s11, 2
    $region56: #{weighted_cross_entropy_loss.1} parent=5 // pred_fallthru
      _
  $region6: #{weighted_cross_entropy_loss.1} parent=0 // loop_footer
    %s15 = sadd.s32 1, %s11
  $region7: #{weighted_cross_entropy_loss.1} parent=0 // loop_footer_branch
    %10 = sbr.rel target = $region3
  $region8: #{weighted_cross_entropy_loss.1} parent=0 // loop_exit
    _

</llo_original>
